<compile_context>
chip_gen: v7x
topology: tpu7x:2x2x1
jax: 0.10.0
libtpu: 0.0.40
codegen_flags: <defaults>
</compile_context>

<pallas_src>
import dataclasses
import functools

import jax
import jax.numpy as jnp
from jax.experimental import pallas as pl
from jax.experimental.pallas import tpu as pltpu


_LANE = 128                    # lane quantum for the last dim (all dtypes)
_MiB = 1024 * 1024
# Keep the double-buffered working set comfortably inside every generation's
# VMEM (v7x is the tightest: 64 MiB physical, 32 MiB scoped default).
_VMEM_BUDGET_BYTES = 48 * _MiB


def _round_up(n: int, m: int) -> int:
    return ((n + m - 1) // m) * m


def _sublane(dtype) -> int:
    # f32 sublane quantum is 8 rows; 16-bit types pack 16 rows per vreg.
    return 16 if jnp.dtype(dtype).itemsize == 2 else 8


def _pad_to(a, shape):
    if tuple(a.shape) == tuple(shape):
        return a
    pads = [(0, t - s) for s, t in zip(a.shape, shape)]
    return jnp.pad(a, pads)


@dataclasses.dataclass(frozen=True)
class FlowParams:
    """Padded + cast parameters. Prepare ONCE at model init, not per call."""
    w1: jax.Array        # [L, Dp, Hp]  compute dtype (bf16 by default)
    b1: jax.Array        # [L, 1,  Hp]  f32 (added to the f32 accumulator)
    w2: jax.Array        # [L, Hp, Dp]  compute dtype
    b2: jax.Array        # [L, 1,  Dp]  f32
    input_dim: int
    hidden_dim: int


def prepare_flow_params(w1, b1, w2, b2, *, compute_dtype=jnp.bfloat16):
    """Pad feature dims to lane multiples and cast the MXU operands.

    w1: [L, D, H]  (stored [in, out], i.e. PyTorch Linear weight transposed)
    b1: [L, H]
    w2: [L, H, D]
    b2: [L, D]

    Zero padding is exact for Linear -> ReLU -> Linear: padded weight rows /
    columns and padded bias entries are 0 and ReLU(0) == 0, so padded feature
    columns stay 0 through every layer.  (This would silently break for an
    activation with f(0) != 0.)
    """
    L, D, H = w1.shape
    Dp = _round_up(D, _LANE)
    Hp = _round_up(H, _LANE)
    w1p = _pad_to(w1, (L, Dp, Hp)).astype(compute_dtype)
    w2p = _pad_to(w2, (L, Hp, Dp)).astype(compute_dtype)
    b1p = _pad_to(b1.reshape(L, 1, H), (L, 1, Hp)).astype(jnp.float32)
    b2p = _pad_to(b2.reshape(L, 1, D), (L, 1, Dp)).astype(jnp.float32)
    return FlowParams(w1p, b1p, w2p, b2p, input_dim=D, hidden_dim=H)


def _flow_kernel(w1_ref, b1_ref, w2_ref, b2_ref, x_ref, o_ref, *,
                 num_layers, compute_dtype):
    """Fused (Linear -> ReLU -> Linear) x num_layers for one batch tile.

    w1_ref: [L, Dp, Hp]   resident across all batch tiles
    b1_ref: [L, 1,  Hp]   f32
    w2_ref: [L, Hp, Dp]
    b2_ref: [L, 1,  Dp]   f32
    x_ref : [bt, Dp]      lane-dense batch tile (compute dtype)
    o_ref : [bt, Dp]
    """
    x = x_ref[...]
    # num_layers is a small static Python int -> fully unrolled at trace time;
    # static ref indices w*_ref[l] are zero-cost slices.
    for l in range(num_layers):
        h = jnp.dot(x, w1_ref[l], preferred_element_type=jnp.float32)
        h = jnp.maximum(h + b1_ref[l], 0.0)          # f32 bias add + ReLU (VPU)
        h = h.astype(compute_dtype)                  # bf16 feed -> MXU full rate
        y = jnp.dot(h, w2_ref[l], preferred_element_type=jnp.float32)
        y = y + b2_ref[l]
        x = y.astype(compute_dtype) if l + 1 < num_layers else y
    o_ref[...] = x.astype(o_ref.dtype)               # one unmasked lane-dense store


def normalizing_flow_forward(x, params: FlowParams, *, batch_tile=1024):
    """Forward pass of NormalizingFlowModel.  x: [B, D] -> [B, D]."""
    B, D = x.shape
    assert D == params.input_dim, "input_dim mismatch with prepared params"
    L, Dp, Hp = params.w1.shape
    compute_dtype = params.w1.dtype
    out_dtype = x.dtype

    sub = _sublane(compute_dtype)
    bt = min(_round_up(B, sub), _round_up(batch_tile, sub))
    # v7x megacore: guarantee >= 2 parallel batch tiles whenever B allows it,
    # so the grid axis can actually shard across both TensorCores.
    if _round_up(B, bt) // bt < 2 and B > sub:
        bt = _round_up((B + 1) // 2, sub)

    def _vmem_bytes(tile):
        wb = (params.w1.nbytes + params.w2.nbytes
              + params.b1.nbytes + params.b2.nbytes)
        xb = tile * Dp * jnp.dtype(compute_dtype).itemsize
        ob = tile * Dp * jnp.dtype(out_dtype).itemsize
        return 2 * (wb + xb + ob)        # BlockSpec operands are double-buffered

    # Shrink the batch tile if the working set would blow the VMEM budget.
    while bt > sub and _vmem_bytes(bt) > _VMEM_BUDGET_BYTES:
        bt = max(sub, _round_up(bt // 2, sub))

    Bp = _round_up(B, bt)
    grid = (Bp // bt,)

    # Activation pad/cast only when actually needed (skip extra HBM passes
    # when B % bt == 0, D % 128 == 0 and dtype already matches).
    xp = x
    if xp.dtype != compute_dtype:
        xp = xp.astype(compute_dtype)
    if (Bp, Dp) != (B, D):
        xp = jnp.pad(xp, ((0, Bp - B), (0, Dp - D)))

    flops = 2 * Bp * L * (Dp * Hp + Hp * Dp)
    bytes_accessed = (xp.nbytes
                      + Bp * Dp * jnp.dtype(out_dtype).itemsize
                      + params.w1.nbytes + params.w2.nbytes
                      + params.b1.nbytes + params.b2.nbytes)
    vmem_limit = int(min(max(2 * _vmem_bytes(bt), 32 * _MiB), 64 * _MiB))

    out = pl.pallas_call(
        functools.partial(_flow_kernel, num_layers=L,
                          compute_dtype=compute_dtype),
        out_shape=jax.ShapeDtypeStruct((Bp, Dp), out_dtype),
        grid_spec=pltpu.PrefetchScalarGridSpec(
            num_scalar_prefetch=0,
            grid=grid,
            in_specs=[
                # Weights/biases: constant block index -> DMA'd once, resident
                # in VMEM across all batch tiles.
                pl.BlockSpec((L, Dp, Hp), lambda i: (0, 0, 0)),
                pl.BlockSpec((L, 1, Hp), lambda i: (0, 0, 0)),
                pl.BlockSpec((L, Hp, Dp), lambda i: (0, 0, 0)),
                pl.BlockSpec((L, 1, Dp), lambda i: (0, 0, 0)),
                # Activations: one lane-dense batch tile per grid step.
                pl.BlockSpec((bt, Dp), lambda i: (i, 0)),
            ],
            out_specs=pl.BlockSpec((bt, Dp), lambda i: (i, 0)),
        ),
        compiler_params=pltpu.CompilerParams(
            dimension_semantics=("parallel",),   # batch tiles are independent
            vmem_limit_bytes=vmem_limit,
        ),
        cost_estimate=pl.CostEstimate(
            flops=flops, transcendentals=0, bytes_accessed=bytes_accessed),
    )(params.w1, params.b1, params.w2, params.b2, xp)

    if (Bp, Dp) != (B, D):
        out = out[:B, :D]
    return out


def _reference_forward(x, w1, b1, w2, b2):
    """Pure-JAX f32 reference mirroring the PyTorch forward."""
    L = w1.shape[0]
    for l in range(L):
        x = jnp.maximum(x @ w1[l] + b1[l], 0.0)
        x = x @ w2[l] + b2[l]
    return x


if __name__ == "__main__":
    # Small shapes consistent with the module: batch=8, input_dim=16,
    # hidden_dim=32, num_layers=3.
    B, D, H, L = 8, 16, 32, 3

    key = jax.random.PRNGKey(0)
    kx, k1, k2, k3, k4 = jax.random.split(key, 5)

    x = jax.random.normal(kx, (B, D), jnp.float32)

    # PyTorch-Linear-style uniform(-1/sqrt(fan_in), +1/sqrt(fan_in)) init.
    bound1 = 1.0 / (D ** 0.5)
    bound2 = 1.0 / (H ** 0.5)
    w1 = jax.random.uniform(k1, (L, D, H), jnp.float32, -bound1, bound1)
    b1 = jax.random.uniform(k2, (L, H), jnp.float32, -bound1, bound1)
    w2 = jax.random.uniform(k3, (L, H, D), jnp.float32, -bound2, bound2)
    b2 = jax.random.uniform(k4, (L, D), jnp.float32, -bound2, bound2)

    ref = _reference_forward(x, w1, b1, w2, b2)

    # 1) f32 compute path: matches the f32 reference tightly.
    params_f32 = prepare_flow_params(w1, b1, w2, b2, compute_dtype=jnp.float32)
    out_f32 = jax.block_until_ready(normalizing_flow_forward(x, params_f32))
    assert out_f32.shape == (B, D)
    assert jnp.allclose(out_f32, ref, atol=1e-5, rtol=1e-5)

    # 2) Default bf16-MXU-feed path (f32 accumulation): fast path, bf16-level
    #    tolerance vs the f32 reference.
    params_bf16 = prepare_flow_params(w1, b1, w2, b2)   # compute_dtype=bf16
    out_bf16 = jax.block_until_ready(normalizing_flow_forward(x, params_bf16))
    assert out_bf16.shape == (B, D)
    assert jnp.allclose(out_bf16, ref, atol=5e-2, rtol=5e-2)

    print("KERNEL_OK")
</pallas_src>

<mosaic_0001>
module attributes {stable_mosaic.version = 11 : i64} {
  func.func @_flow_kernel(%arg0: i32, %arg1: memref<3x128x128xf32, #tpu.memory_space<vmem>>, %arg2: memref<3x1x128xf32, #tpu.memory_space<vmem>>, %arg3: memref<3x128x128xf32, #tpu.memory_space<vmem>>, %arg4: memref<3x1x128xf32, #tpu.memory_space<vmem>>, %arg5: memref<8x128xf32, #tpu.memory_space<vmem>>, %arg6: memref<8x128xf32, #tpu.memory_space<vmem>>) attributes {dimension_semantics = [#tpu.dimension_semantics<parallel>], iteration_bounds = array<i64: 1>, scalar_prefetch = 0 : i64, scratch_operands = 0 : i64, tpu.core_type = #tpu.core_type<tc>, window_params = [{pipeline_mode = #tpu.pipeline_mode<synchronous>, transform_indices = @transform_0, window_bounds = array<i64: 3, 128, 128>}, {pipeline_mode = #tpu.pipeline_mode<synchronous>, transform_indices = @transform_1, window_bounds = array<i64: 3, 1, 128>}, {pipeline_mode = #tpu.pipeline_mode<synchronous>, transform_indices = @transform_2, window_bounds = array<i64: 3, 128, 128>}, {pipeline_mode = #tpu.pipeline_mode<synchronous>, transform_indices = @transform_3, window_bounds = array<i64: 3, 1, 128>}, {transform_indices = @transform_4, window_bounds = array<i64: 8, 128>}, {transform_indices = @transform_5, window_bounds = array<i64: 8, 128>}]} {
    %c0 = arith.constant 0 : index
    %c0_0 = arith.constant 0 : index
    %0 = vector.load %arg5[%c0, %c0_0] : memref<8x128xf32, #tpu.memory_space<vmem>>, vector<8x128xf32>
    %c0_1 = arith.constant 0 : index
    %c0_2 = arith.constant 0 : index
    %c0_3 = arith.constant 0 : index
    %1 = vector.load %arg1[%c0_1, %c0_2, %c0_3] : memref<3x128x128xf32, #tpu.memory_space<vmem>>, vector<1x128x128xf32>
    %2 = vector.shape_cast %1 : vector<1x128x128xf32> to vector<128x128xf32>
    %cst = arith.constant dense<0.000000e+00> : vector<8x128xf32>
    %3 = tpu.matmul %0, %2, %cst {dimension_numbers = #tpu.dot_dimension_numbers<[1], [0], [0], [1], [0, 0, 1, 1], [], []>} : vector<8x128xf32>, vector<128x128xf32>, vector<8x128xf32> -> vector<8x128xf32>
    %c0_4 = arith.constant 0 : index
    %c0_5 = arith.constant 0 : index
    %c0_6 = arith.constant 0 : index
    %4 = vector.load %arg2[%c0_4, %c0_5, %c0_6] : memref<3x1x128xf32, #tpu.memory_space<vmem>>, vector<1x1x128xf32>
    %5 = vector.shape_cast %4 : vector<1x1x128xf32> to vector<1x128xf32>
    %6 = vector.broadcast %5 : vector<1x128xf32> to vector<8x128xf32>
    %7 = arith.addf %3, %6 : vector<8x128xf32>
    %cst_7 = arith.constant 0.000000e+00 : f32
    %8 = vector.broadcast %cst_7 : f32 to vector<8x128xf32>
    %9 = arith.maximumf %7, %8 : vector<8x128xf32>
    %c0_8 = arith.constant 0 : index
    %c0_9 = arith.constant 0 : index
    %c0_10 = arith.constant 0 : index
    %10 = vector.load %arg3[%c0_8, %c0_9, %c0_10] : memref<3x128x128xf32, #tpu.memory_space<vmem>>, vector<1x128x128xf32>
    %11 = vector.shape_cast %10 : vector<1x128x128xf32> to vector<128x128xf32>
    %cst_11 = arith.constant dense<0.000000e+00> : vector<8x128xf32>
    %12 = tpu.matmul %9, %11, %cst_11 {dimension_numbers = #tpu.dot_dimension_numbers<[1], [0], [0], [1], [0, 0, 1, 1], [], []>} : vector<8x128xf32>, vector<128x128xf32>, vector<8x128xf32> -> vector<8x128xf32>
    %c0_12 = arith.constant 0 : index
    %c0_13 = arith.constant 0 : index
    %c0_14 = arith.constant 0 : index
    %13 = vector.load %arg4[%c0_12, %c0_13, %c0_14] : memref<3x1x128xf32, #tpu.memory_space<vmem>>, vector<1x1x128xf32>
    %14 = vector.shape_cast %13 : vector<1x1x128xf32> to vector<1x128xf32>
    %15 = vector.broadcast %14 : vector<1x128xf32> to vector<8x128xf32>
    %16 = arith.addf %12, %15 : vector<8x128xf32>
    %c1 = arith.constant 1 : index
    %c0_15 = arith.constant 0 : index
    %c0_16 = arith.constant 0 : index
    %17 = vector.load %arg1[%c1, %c0_15, %c0_16] : memref<3x128x128xf32, #tpu.memory_space<vmem>>, vector<1x128x128xf32>
    %18 = vector.shape_cast %17 : vector<1x128x128xf32> to vector<128x128xf32>
    %cst_17 = arith.constant dense<0.000000e+00> : vector<8x128xf32>
    %19 = tpu.matmul %16, %18, %cst_17 {dimension_numbers = #tpu.dot_dimension_numbers<[1], [0], [0], [1], [0, 0, 1, 1], [], []>} : vector<8x128xf32>, vector<128x128xf32>, vector<8x128xf32> -> vector<8x128xf32>
    %c1_18 = arith.constant 1 : index
    %c0_19 = arith.constant 0 : index
    %c0_20 = arith.constant 0 : index
    %20 = vector.load %arg2[%c1_18, %c0_19, %c0_20] : memref<3x1x128xf32, #tpu.memory_space<vmem>>, vector<1x1x128xf32>
    %21 = vector.shape_cast %20 : vector<1x1x128xf32> to vector<1x128xf32>
    %22 = vector.broadcast %21 : vector<1x128xf32> to vector<8x128xf32>
    %23 = arith.addf %19, %22 : vector<8x128xf32>
    %cst_21 = arith.constant 0.000000e+00 : f32
    %24 = vector.broadcast %cst_21 : f32 to vector<8x128xf32>
    %25 = arith.maximumf %23, %24 : vector<8x128xf32>
    %c1_22 = arith.constant 1 : index
    %c0_23 = arith.constant 0 : index
    %c0_24 = arith.constant 0 : index
    %26 = vector.load %arg3[%c1_22, %c0_23, %c0_24] : memref<3x128x128xf32, #tpu.memory_space<vmem>>, vector<1x128x128xf32>
    %27 = vector.shape_cast %26 : vector<1x128x128xf32> to vector<128x128xf32>
    %cst_25 = arith.constant dense<0.000000e+00> : vector<8x128xf32>
    %28 = tpu.matmul %25, %27, %cst_25 {dimension_numbers = #tpu.dot_dimension_numbers<[1], [0], [0], [1], [0, 0, 1, 1], [], []>} : vector<8x128xf32>, vector<128x128xf32>, vector<8x128xf32> -> vector<8x128xf32>
    %c1_26 = arith.constant 1 : index
    %c0_27 = arith.constant 0 : index
    %c0_28 = arith.constant 0 : index
    %29 = vector.load %arg4[%c1_26, %c0_27, %c0_28] : memref<3x1x128xf32, #tpu.memory_space<vmem>>, vector<1x1x128xf32>
    %30 = vector.shape_cast %29 : vector<1x1x128xf32> to vector<1x128xf32>
    %31 = vector.broadcast %30 : vector<1x128xf32> to vector<8x128xf32>
    %32 = arith.addf %28, %31 : vector<8x128xf32>
    %c2 = arith.constant 2 : index
    %c0_29 = arith.constant 0 : index
    %c0_30 = arith.constant 0 : index
    %33 = vector.load %arg1[%c2, %c0_29, %c0_30] : memref<3x128x128xf32, #tpu.memory_space<vmem>>, vector<1x128x128xf32>
    %34 = vector.shape_cast %33 : vector<1x128x128xf32> to vector<128x128xf32>
    %cst_31 = arith.constant dense<0.000000e+00> : vector<8x128xf32>
    %35 = tpu.matmul %32, %34, %cst_31 {dimension_numbers = #tpu.dot_dimension_numbers<[1], [0], [0], [1], [0, 0, 1, 1], [], []>} : vector<8x128xf32>, vector<128x128xf32>, vector<8x128xf32> -> vector<8x128xf32>
    %c2_32 = arith.constant 2 : index
    %c0_33 = arith.constant 0 : index
    %c0_34 = arith.constant 0 : index
    %36 = vector.load %arg2[%c2_32, %c0_33, %c0_34] : memref<3x1x128xf32, #tpu.memory_space<vmem>>, vector<1x1x128xf32>
    %37 = vector.shape_cast %36 : vector<1x1x128xf32> to vector<1x128xf32>
    %38 = vector.broadcast %37 : vector<1x128xf32> to vector<8x128xf32>
    %39 = arith.addf %35, %38 : vector<8x128xf32>
    %cst_35 = arith.constant 0.000000e+00 : f32
    %40 = vector.broadcast %cst_35 : f32 to vector<8x128xf32>
    %41 = arith.maximumf %39, %40 : vector<8x128xf32>
    %c2_36 = arith.constant 2 : index
    %c0_37 = arith.constant 0 : index
    %c0_38 = arith.constant 0 : index
    %42 = vector.load %arg3[%c2_36, %c0_37, %c0_38] : memref<3x128x128xf32, #tpu.memory_space<vmem>>, vector<1x128x128xf32>
    %43 = vector.shape_cast %42 : vector<1x128x128xf32> to vector<128x128xf32>
    %cst_39 = arith.constant dense<0.000000e+00> : vector<8x128xf32>
    %44 = tpu.matmul %41, %43, %cst_39 {dimension_numbers = #tpu.dot_dimension_numbers<[1], [0], [0], [1], [0, 0, 1, 1], [], []>} : vector<8x128xf32>, vector<128x128xf32>, vector<8x128xf32> -> vector<8x128xf32>
    %c2_40 = arith.constant 2 : index
    %c0_41 = arith.constant 0 : index
    %c0_42 = arith.constant 0 : index
    %45 = vector.load %arg4[%c2_40, %c0_41, %c0_42] : memref<3x1x128xf32, #tpu.memory_space<vmem>>, vector<1x1x128xf32>
    %46 = vector.shape_cast %45 : vector<1x1x128xf32> to vector<1x128xf32>
    %47 = vector.broadcast %46 : vector<1x128xf32> to vector<8x128xf32>
    %48 = arith.addf %44, %47 : vector<8x128xf32>
    %c0_43 = arith.constant 0 : index
    %c0_44 = arith.constant 0 : index
    %49 = vector.load %arg6[%c0_43, %c0_44] : memref<8x128xf32, #tpu.memory_space<vmem>>, vector<8x128xf32>
    tpu.vector_store %arg6[%c0_43, %c0_44], %48 {strides = array<i32>} : memref<8x128xf32, #tpu.memory_space<vmem>>, vector<8x128xf32>,
    return
  }
  func.func @transform_0(%arg0: i32) -> (i32, i32, i32) {
    %c0_i32 = arith.constant 0 : i32
    %c0_i32_0 = arith.constant 0 : i32
    %c0_i32_1 = arith.constant 0 : i32
    %c0_i32_2 = arith.constant 0 : i32
    return %c0_i32, %c0_i32_0, %c0_i32_1 : i32, i32, i32
  }
  func.func @transform_1(%arg0: i32) -> (i32, i32, i32) {
    %c0_i32 = arith.constant 0 : i32
    %c0_i32_0 = arith.constant 0 : i32
    %c0_i32_1 = arith.constant 0 : i32
    %c0_i32_2 = arith.constant 0 : i32
    return %c0_i32, %c0_i32_0, %c0_i32_1 : i32, i32, i32
  }
  func.func @transform_2(%arg0: i32) -> (i32, i32, i32) {
    %c0_i32 = arith.constant 0 : i32
    %c0_i32_0 = arith.constant 0 : i32
    %c0_i32_1 = arith.constant 0 : i32
    %c0_i32_2 = arith.constant 0 : i32
    return %c0_i32, %c0_i32_0, %c0_i32_1 : i32, i32, i32
  }
  func.func @transform_3(%arg0: i32) -> (i32, i32, i32) {
    %c0_i32 = arith.constant 0 : i32
    %c0_i32_0 = arith.constant 0 : i32
    %c0_i32_1 = arith.constant 0 : i32
    %c0_i32_2 = arith.constant 0 : i32
    return %c0_i32, %c0_i32_0, %c0_i32_1 : i32, i32, i32
  }
  func.func @transform_4(%arg0: i32) -> (i32, i32) {
    %c0_i32 = arith.constant 0 : i32
    %c0_i32_0 = arith.constant 0 : i32
    return %arg0, %c0_i32 : i32, i32
  }
  func.func @transform_5(%arg0: i32) -> (i32, i32) {
    %c0_i32 = arith.constant 0 : i32
    %c0_i32_0 = arith.constant 0 : i32
    return %arg0, %c0_i32 : i32, i32
  }
}

</mosaic_0001>

<llo_original>
// kernel: tpu_custom_call.1
$region0: #{tpu_custom_call.1}
  #allocation0 [shape = 'u32[]', space=smem, size = 0x4, offset = 0x4, fixed_abs, tag = 'smem constant byte address 0x4 - core index']
  #allocation1 [shape = 'u32[144,128]{1,0:T(1,128)}', space=vmem, size = 0x12000, scoped, tag = 'internal scratch']
  %s0 = inlined_call_operand.hbm [shape: f32[3,128,128], index: 0, kind: input, shape index: {}]
  %s1 = inlined_call_operand.vmem [shape: f32[3,1,128], index: 1, kind: input, shape index: {}]
  %s2 = inlined_call_operand.hbm [shape: f32[3,128,128], index: 2, kind: input, shape index: {}]
  %s3 = inlined_call_operand.vmem [shape: f32[3,1,128], index: 3, kind: input, shape index: {}]
  %s4 = inlined_call_operand.vmem [shape: f32[8,128], index: 4, kind: input, shape index: {}]
  %s5 = inlined_call_operand.hbm [shape: f32[8,128], index: 5, kind: output, shape index: {}]
  %s6 = sld [smem:[#allocation0]]
  $region38: #{tpu_custom_call.1} parent=0
    _
  %s8 = ssub.s32 1, %s6
  %s9 = scalar_select 0, %s8, %s6
  $region1: #{tpu_custom_call.1} parent=0
    #allocation2 [shape = 'u8[196608]{0}', space=vmem, size = 0x30000, scoped, tag = 'input window, operand 0, single buffered']
    #allocation3 [shape = 's32[1]{0}', space=sflag, size = 0x4, scoped, tag = 'scoped memory for tpu_custom_call.1']
    #allocation4 [shape = 's32[1]{0}', space=sflag, size = 0x4, scoped, tag = 'scoped memory for tpu_custom_call.1']
    #allocation5 [shape = 'u8[196608]{0}', space=vmem, size = 0x30000, scoped, tag = 'input window, operand 2, single buffered']
    #allocation6 [shape = 's32[1]{0}', space=sflag, size = 0x4, scoped, tag = 'scoped memory for tpu_custom_call.1']
    #allocation7 [shape = 'u8[4096]{0}', space=vmem, size = 0x1000, scoped, tag = 'output window, operand 0, single buffered']
    %10 = vsyncpa [#allocation3], 0
    %11 = vsyncpa [#allocation6], 0
    %12 = vsyncpa [#allocation4], 0
    // Predicated region
    $region2: #{tpu_custom_call.1} parent=1 // pred_check
      _
    $region3: #{tpu_custom_call.1} parent=1 // pred_check_branch
      %14 = sbr.rel (0) target = $region5
    $region4: #{tpu_custom_call.1} parent=1 // pred_region
      %s16 = ssub.s32 6144, 6144
      %17 = vsyncadd [#allocation3], %s16
      %s18 = sshll.u32 [#allocation2], 4
      %s19 = int_to_ptr.vmem [resolvable:$true] %s18
      %24 = dma.hbm_to_vmem [thread:$0]  %s0, 6144, %s19, [#allocation3], 128, 128, 8
    $region5: #{tpu_custom_call.1} parent=1 // pred_fallthru
      _
    // Predicated region
    $region6: #{tpu_custom_call.1} parent=1 // pred_check
      _
    $region7: #{tpu_custom_call.1} parent=1 // pred_check_branch
      %26 = sbr.rel (0) target = $region9
    $region8: #{tpu_custom_call.1} parent=1 // pred_region
      _
    $region9: #{tpu_custom_call.1} parent=1 // pred_fallthru
      _
    // Predicated region
    $region10: #{tpu_custom_call.1} parent=1 // pred_check
      _
    $region11: #{tpu_custom_call.1} parent=1 // pred_check_branch
      %28 = sbr.rel (0) target = $region13
    $region12: #{tpu_custom_call.1} parent=1 // pred_region
      %s30 = ssub.s32 6144, 6144
      %31 = vsyncadd [#allocation6], %s30
      %s32 = sshll.u32 [#allocation5], 4
      %s33 = int_to_ptr.vmem [resolvable:$true] %s32
      %38 = dma.hbm_to_vmem [thread:$0]  %s2, 6144, %s33, [#allocation6], 128, 128, 8
    $region13: #{tpu_custom_call.1} parent=1 // pred_fallthru
      _
    // Predicated region
    $region14: #{tpu_custom_call.1} parent=1 // pred_check
      _
    $region15: #{tpu_custom_call.1} parent=1 // pred_check_branch
      %40 = sbr.rel (0) target = $region17
    $region16: #{tpu_custom_call.1} parent=1 // pred_region
      _
    $region17: #{tpu_custom_call.1} parent=1 // pred_fallthru
      _
    // Predicated region
    $region18: #{tpu_custom_call.1} parent=1 // pred_check
      _
    $region19: #{tpu_custom_call.1} parent=1 // pred_check_branch
      %42 = sbr.rel (0) target = $region21
    $region20: #{tpu_custom_call.1} parent=1 // pred_region
      _
    $region21: #{tpu_custom_call.1} parent=1 // pred_fallthru
      _
    // Predicated region
    $region22: #{tpu_custom_call.1} parent=1 // pred_check
      _
    $region23: #{tpu_custom_call.1} parent=1 // pred_check_branch
      %44 = sbr.rel (0) target = $region25
    $region24: #{tpu_custom_call.1} parent=1 // pred_region
      %45 = dma.done [#allocation3], 6144
    $region25: #{tpu_custom_call.1} parent=1 // pred_fallthru
      _
    // Predicated region
    $region26: #{tpu_custom_call.1} parent=1 // pred_check
      _
    $region27: #{tpu_custom_call.1} parent=1 // pred_check_branch
      %47 = sbr.rel (0) target = $region29
    $region28: #{tpu_custom_call.1} parent=1 // pred_region
      %48 = dma.done [#allocation6], 6144
    $region29: #{tpu_custom_call.1} parent=1 // pred_fallthru
      _
    %v49 = vld [vmem:[%s4] sm:$0xff]
    %v50 = vld [vmem:[#allocation2] sm:$0xff]
    %v51 = vld [vmem:[#allocation2 + $0x8] sm:$0xff]
    %v52 = vld [vmem:[#allocation2 + $0x10] sm:$0xff]
    %v53 = vld [vmem:[#allocation2 + $0x18] sm:$0xff]
    %v54 = vld [vmem:[#allocation2 + $0x20] sm:$0xff]
    %v55 = vld [vmem:[#allocation2 + $0x28] sm:$0xff]
    %v56 = vld [vmem:[#allocation2 + $0x30] sm:$0xff]
    %v57 = vld [vmem:[#allocation2 + $0x38] sm:$0xff]
    %v58 = vld [vmem:[#allocation2 + $0x40] sm:$0xff]
    %v59 = vld [vmem:[#allocation2 + $0x48] sm:$0xff]
    %v60 = vld [vmem:[#allocation2 + $0x50] sm:$0xff]
    %v61 = vld [vmem:[#allocation2 + $0x58] sm:$0xff]
    %v62 = vld [vmem:[#allocation2 + $0x60] sm:$0xff]
    %v63 = vld [vmem:[#allocation2 + $0x68] sm:$0xff]
    %v64 = vld [vmem:[#allocation2 + $0x70] sm:$0xff]
    %v65 = vld [vmem:[#allocation2 + $0x78] sm:$0xff]
    %v66 = vld [vmem:[%s1] sm:$0x1]
    %v68 = vlaneseq
    %v69 = vshrl.u32 %v68, 7
    %v70 = vsub.s32 0, %v69
    %v71 = vrot.slane %v66, %v70
    %73 = vmatprep.subr.mxu0 0.0
    %74 = vmatpush1.msra.mxu0 %v50
    %75 = vmatprep.subr.mxu0 0.0
    %76 = vmatpush1.msra.mxu0 %v51
    %77 = vmatprep.subr.mxu0 0.0
    %78 = vmatpush1.msra.mxu0 %v52
    %79 = vmatprep.subr.mxu0 0.0
    %80 = vmatpush1.msra.mxu0 %v53
    %81 = vmatprep.subr.mxu0 0.0
    %82 = vmatpush1.msra.mxu0 %v54
    %83 = vmatprep.subr.mxu0 0.0
    %84 = vmatpush1.msra.mxu0 %v55
    %85 = vmatprep.subr.mxu0 0.0
    %86 = vmatpush1.msra.mxu0 %v56
    %87 = vmatprep.subr.mxu0 0.0
    %88 = vmatpush1.msra.mxu0 %v57
    %89 = vmatprep.subr.mxu0 0.0
    %90 = vmatpush1.msra.mxu0 %v58
    %91 = vmatprep.subr.mxu0 0.0
    %92 = vmatpush1.msra.mxu0 %v59
    %93 = vmatprep.subr.mxu0 0.0
    %94 = vmatpush1.msra.mxu0 %v60
    %95 = vmatprep.subr.mxu0 0.0
    %96 = vmatpush1.msra.mxu0 %v61
    %97 = vmatprep.subr.mxu0 0.0
    %98 = vmatpush1.msra.mxu0 %v62
    %99 = vmatprep.subr.mxu0 0.0
    %100 = vmatpush1.msra.mxu0 %v63
    %101 = vmatprep.subr.mxu0 0.0
    %102 = vmatpush1.msra.mxu0 %v64
    %103 = vmatprep.subr.mxu0 0.0
    %104 = vmatpush1.msra.mxu0 %v65
    %105 = vmatprep.subr.mxu0 0.0
    %106 = vmatpush1.msra.mxu0 0.0
    %107 = vmatprep.subr.mxu0 0.0
    %108 = vmatpush1.msra.mxu0 0.0
    %109 = vmatprep.subr.mxu0 0.0
    %110 = vmatpush1.msra.mxu0 0.0
    %111 = vmatprep.subr.mxu0 0.0
    %112 = vmatpush1.msra.mxu0 0.0
    %113 = vmatprep.subr.mxu0 0.0
    %114 = vmatpush1.msra.mxu0 0.0
    %115 = vmatprep.subr.mxu0 0.0
    %116 = vmatpush1.msra.mxu0 0.0
    %117 = vmatprep.subr.mxu0 0.0
    %118 = vmatpush1.msra.mxu0 0.0
    %119 = vmatprep.subr.mxu0 0.0
    %120 = vmatpush1.msra.mxu0 0.0
    %121 = vmatprep.subr.mxu0 0.0
    %122 = vmatpush1.msra.mxu0 0.0
    %123 = vmatprep.subr.mxu0 0.0
    %124 = vmatpush1.msra.mxu0 0.0
    %125 = vmatprep.subr.mxu0 0.0
    %126 = vmatpush1.msra.mxu0 0.0
    %127 = vmatprep.subr.mxu0 0.0
    %128 = vmatpush1.msra.mxu0 0.0
    %129 = vmatprep.subr.mxu0 0.0
    %130 = vmatpush1.msra.mxu0 0.0
    %131 = vmatprep.subr.mxu0 0.0
    %132 = vmatpush1.msra.mxu0 0.0
    %133 = vmatprep.subr.mxu0 0.0
    %134 = vmatpush1.msra.mxu0 0.0
    %135 = vmatprep.subr.mxu0 0.0
    %136 = vmatpush1.msra.mxu0 0.0
    %137 = vmatprep.mubr.f32.mxu0 0.0
    %138 = vmatmul.mubr.f32.gmra.mrb[0].mxu0 %v49
    %v139 = vpop.f32.mrb[0].mxu0
    %v140 = vadd.f32 %v71, %v139
    %v141 = vpop.f32.mrb[0].mxu0
    %142 = vdwg.mxu0
    %v143 = vmax.f32 %v140, 0.0
    %v144 = vld [vmem:[#allocation5] sm:$0xff]
    %v145 = vld [vmem:[#allocation5 + $0x8] sm:$0xff]
    %v146 = vld [vmem:[#allocation5 + $0x10] sm:$0xff]
    %v147 = vld [vmem:[#allocation5 + $0x18] sm:$0xff]
    %v148 = vld [vmem:[#allocation5 + $0x20] sm:$0xff]
    %v149 = vld [vmem:[#allocation5 + $0x28] sm:$0xff]
    %v150 = vld [vmem:[#allocation5 + $0x30] sm:$0xff]
    %v151 = vld [vmem:[#allocation5 + $0x38] sm:$0xff]
    %v152 = vld [vmem:[#allocation5 + $0x40] sm:$0xff]
    %v153 = vld [vmem:[#allocation5 + $0x48] sm:$0xff]
    %v154 = vld [vmem:[#allocation5 + $0x50] sm:$0xff]
    %v155 = vld [vmem:[#allocation5 + $0x58] sm:$0xff]
    %v156 = vld [vmem:[#allocation5 + $0x60] sm:$0xff]
    %v157 = vld [vmem:[#allocation5 + $0x68] sm:$0xff]
    %v158 = vld [vmem:[#allocation5 + $0x70] sm:$0xff]
    %v159 = vld [vmem:[#allocation5 + $0x78] sm:$0xff]
    %v160 = vld [vmem:[%s3] sm:$0x1]
    %v162 = vlaneseq
    %v163 = vshrl.u32 %v162, 7
    %v164 = vsub.s32 0, %v163
    %v165 = vrot.slane %v160, %v164
    %167 = vmatprep.subr.mxu0 0.0
    %168 = vmatpush1.msra.mxu0 %v144
    %169 = vmatprep.subr.mxu0 0.0
    %170 = vmatpush1.msra.mxu0 %v145
    %171 = vmatprep.subr.mxu0 0.0
    %172 = vmatpush1.msra.mxu0 %v146
    %173 = vmatprep.subr.mxu0 0.0
    %174 = vmatpush1.msra.mxu0 %v147
    %175 = vmatprep.subr.mxu0 0.0
    %176 = vmatpush1.msra.mxu0 %v148
    %177 = vmatprep.subr.mxu0 0.0
    %178 = vmatpush1.msra.mxu0 %v149
    %179 = vmatprep.subr.mxu0 0.0
    %180 = vmatpush1.msra.mxu0 %v150
    %181 = vmatprep.subr.mxu0 0.0
    %182 = vmatpush1.msra.mxu0 %v151
    %183 = vmatprep.subr.mxu0 0.0
    %184 = vmatpush1.msra.mxu0 %v152
    %185 = vmatprep.subr.mxu0 0.0
    %186 = vmatpush1.msra.mxu0 %v153
    %187 = vmatprep.subr.mxu0 0.0
    %188 = vmatpush1.msra.mxu0 %v154
    %189 = vmatprep.subr.mxu0 0.0
    %190 = vmatpush1.msra.mxu0 %v155
    %191 = vmatprep.subr.mxu0 0.0
    %192 = vmatpush1.msra.mxu0 %v156
    %193 = vmatprep.subr.mxu0 0.0
    %194 = vmatpush1.msra.mxu0 %v157
    %195 = vmatprep.subr.mxu0 0.0
    %196 = vmatpush1.msra.mxu0 %v158
    %197 = vmatprep.subr.mxu0 0.0
    %198 = vmatpush1.msra.mxu0 %v159
    %199 = vmatprep.subr.mxu0 0.0
    %200 = vmatpush1.msra.mxu0 0.0
    %201 = vmatprep.subr.mxu0 0.0
    %202 = vmatpush1.msra.mxu0 0.0
    %203 = vmatprep.subr.mxu0 0.0
    %204 = vmatpush1.msra.mxu0 0.0
    %205 = vmatprep.subr.mxu0 0.0
    %206 = vmatpush1.msra.mxu0 0.0
    %207 = vmatprep.subr.mxu0 0.0
    %208 = vmatpush1.msra.mxu0 0.0
    %209 = vmatprep.subr.mxu0 0.0
    %210 = vmatpush1.msra.mxu0 0.0
    %211 = vmatprep.subr.mxu0 0.0
    %212 = vmatpush1.msra.mxu0 0.0
    %213 = vmatprep.subr.mxu0 0.0
    %214 = vmatpush1.msra.mxu0 0.0
    %215 = vmatprep.subr.mxu0 0.0
    %216 = vmatpush1.msra.mxu0 0.0
    %217 = vmatprep.subr.mxu0 0.0
    %218 = vmatpush1.msra.mxu0 0.0
    %219 = vmatprep.subr.mxu0 0.0
    %220 = vmatpush1.msra.mxu0 0.0
    %221 = vmatprep.subr.mxu0 0.0
    %222 = vmatpush1.msra.mxu0 0.0
    %223 = vmatprep.subr.mxu0 0.0
    %224 = vmatpush1.msra.mxu0 0.0
    %225 = vmatprep.subr.mxu0 0.0
    %226 = vmatpush1.msra.mxu0 0.0
    %227 = vmatprep.subr.mxu0 0.0
    %228 = vmatpush1.msra.mxu0 0.0
    %229 = vmatprep.subr.mxu0 0.0
    %230 = vmatpush1.msra.mxu0 0.0
    %231 = vmatprep.mubr.f32.mxu0 0.0
    %232 = vmatmul.mubr.f32.gmra.mrb[0].mxu0 %v143
    %v233 = vpop.f32.mrb[0].mxu0
    %v234 = vadd.f32 %v165, %v233
    %v235 = vpop.f32.mrb[0].mxu0
    %236 = vdwg.mxu0
    %s237 = scalar_lea.vmem [#allocation2], 128
    %v238 = vld [vmem:[%s237] sm:$0xff]
    %v239 = vld [vmem:[%s237 + $0x8] sm:$0xff]
    %v240 = vld [vmem:[%s237 + $0x10] sm:$0xff]
    %v241 = vld [vmem:[%s237 + $0x18] sm:$0xff]
    %v242 = vld [vmem:[%s237 + $0x20] sm:$0xff]
    %v243 = vld [vmem:[%s237 + $0x28] sm:$0xff]
    %v244 = vld [vmem:[%s237 + $0x30] sm:$0xff]
    %v245 = vld [vmem:[%s237 + $0x38] sm:$0xff]
    %v246 = vld [vmem:[%s237 + $0x40] sm:$0xff]
    %v247 = vld [vmem:[%s237 + $0x48] sm:$0xff]
    %v248 = vld [vmem:[%s237 + $0x50] sm:$0xff]
    %v249 = vld [vmem:[%s237 + $0x58] sm:$0xff]
    %v250 = vld [vmem:[%s237 + $0x60] sm:$0xff]
    %v251 = vld [vmem:[%s237 + $0x68] sm:$0xff]
    %v252 = vld [vmem:[%s237 + $0x70] sm:$0xff]
    %v253 = vld [vmem:[%s237 + $0x78] sm:$0xff]
    %s254 = scalar_lea.vmem %s1, 1
    %v255 = vld [vmem:[%s254] sm:$0x1]
    %v257 = vlaneseq
    %v258 = vshrl.u32 %v257, 7
    %v259 = vsub.s32 0, %v258
    %v260 = vrot.slane %v255, %v259
    %262 = vmatprep.subr.mxu0 0.0
    %263 = vmatpush1.msra.mxu0 %v238
    %264 = vmatprep.subr.mxu0 0.0
    %265 = vmatpush1.msra.mxu0 %v239
    %266 = vmatprep.subr.mxu0 0.0
    %267 = vmatpush1.msra.mxu0 %v240
    %268 = vmatprep.subr.mxu0 0.0
    %269 = vmatpush1.msra.mxu0 %v241
    %270 = vmatprep.subr.mxu0 0.0
    %271 = vmatpush1.msra.mxu0 %v242
    %272 = vmatprep.subr.mxu0 0.0
    %273 = vmatpush1.msra.mxu0 %v243
    %274 = vmatprep.subr.mxu0 0.0
    %275 = vmatpush1.msra.mxu0 %v244
    %276 = vmatprep.subr.mxu0 0.0
    %277 = vmatpush1.msra.mxu0 %v245
    %278 = vmatprep.subr.mxu0 0.0
    %279 = vmatpush1.msra.mxu0 %v246
    %280 = vmatprep.subr.mxu0 0.0
    %281 = vmatpush1.msra.mxu0 %v247
    %282 = vmatprep.subr.mxu0 0.0
    %283 = vmatpush1.msra.mxu0 %v248
    %284 = vmatprep.subr.mxu0 0.0
    %285 = vmatpush1.msra.mxu0 %v249
    %286 = vmatprep.subr.mxu0 0.0
    %287 = vmatpush1.msra.mxu0 %v250
    %288 = vmatprep.subr.mxu0 0.0
    %289 = vmatpush1.msra.mxu0 %v251
    %290 = vmatprep.subr.mxu0 0.0
    %291 = vmatpush1.msra.mxu0 %v252
    %292 = vmatprep.subr.mxu0 0.0
    %293 = vmatpush1.msra.mxu0 %v253
    %294 = vmatprep.subr.mxu0 0.0
    %295 = vmatpush1.msra.mxu0 0.0
    %296 = vmatprep.subr.mxu0 0.0
    %297 = vmatpush1.msra.mxu0 0.0
    %298 = vmatprep.subr.mxu0 0.0
    %299 = vmatpush1.msra.mxu0 0.0
    %300 = vmatprep.subr.mxu0 0.0
    %301 = vmatpush1.msra.mxu0 0.0
    %302 = vmatprep.subr.mxu0 0.0
    %303 = vmatpush1.msra.mxu0 0.0
    %304 = vmatprep.subr.mxu0 0.0
    %305 = vmatpush1.msra.mxu0 0.0
    %306 = vmatprep.subr.mxu0 0.0
    %307 = vmatpush1.msra.mxu0 0.0
    %308 = vmatprep.subr.mxu0 0.0
    %309 = vmatpush1.msra.mxu0 0.0
    %310 = vmatprep.subr.mxu0 0.0
    %311 = vmatpush1.msra.mxu0 0.0
    %312 = vmatprep.subr.mxu0 0.0
    %313 = vmatpush1.msra.mxu0 0.0
    %314 = vmatprep.subr.mxu0 0.0
    %315 = vmatpush1.msra.mxu0 0.0
    %316 = vmatprep.subr.mxu0 0.0
    %317 = vmatpush1.msra.mxu0 0.0
    %318 = vmatprep.subr.mxu0 0.0
    %319 = vmatpush1.msra.mxu0 0.0
    %320 = vmatprep.subr.mxu0 0.0
    %321 = vmatpush1.msra.mxu0 0.0
    %322 = vmatprep.subr.mxu0 0.0
    %323 = vmatpush1.msra.mxu0 0.0
    %324 = vmatprep.subr.mxu0 0.0
    %325 = vmatpush1.msra.mxu0 0.0
    %326 = vmatprep.mubr.f32.mxu0 0.0
    %327 = vmatmul.mubr.f32.gmra.mrb[0].mxu0 %v234
    %v328 = vpop.f32.mrb[0].mxu0
    %v329 = vadd.f32 %v260, %v328
    %v330 = vpop.f32.mrb[0].mxu0
    %331 = vdwg.mxu0
    %v332 = vmax.f32 %v329, 0.0
    %s333 = scalar_lea.vmem [#allocation5], 128
    %v334 = vld [vmem:[%s333] sm:$0xff]
    %v335 = vld [vmem:[%s333 + $0x8] sm:$0xff]
    %v336 = vld [vmem:[%s333 + $0x10] sm:$0xff]
    %v337 = vld [vmem:[%s333 + $0x18] sm:$0xff]
    %v338 = vld [vmem:[%s333 + $0x20] sm:$0xff]
    %v339 = vld [vmem:[%s333 + $0x28] sm:$0xff]
    %v340 = vld [vmem:[%s333 + $0x30] sm:$0xff]
    %v341 = vld [vmem:[%s333 + $0x38] sm:$0xff]
    %v342 = vld [vmem:[%s333 + $0x40] sm:$0xff]
    %v343 = vld [vmem:[%s333 + $0x48] sm:$0xff]
    %v344 = vld [vmem:[%s333 + $0x50] sm:$0xff]
    %v345 = vld [vmem:[%s333 + $0x58] sm:$0xff]
    %v346 = vld [vmem:[%s333 + $0x60] sm:$0xff]
    %v347 = vld [vmem:[%s333 + $0x68] sm:$0xff]
    %v348 = vld [vmem:[%s333 + $0x70] sm:$0xff]
    %v349 = vld [vmem:[%s333 + $0x78] sm:$0xff]
    %s350 = scalar_lea.vmem %s3, 1
    %v351 = vld [vmem:[%s350] sm:$0x1]
    %v353 = vlaneseq
    %v354 = vshrl.u32 %v353, 7
    %v355 = vsub.s32 0, %v354
    %v356 = vrot.slane %v351, %v355
    %358 = vmatprep.subr.mxu0 0.0
    %359 = vmatpush1.msra.mxu0 %v334
    %360 = vmatprep.subr.mxu0 0.0
    %361 = vmatpush1.msra.mxu0 %v335
    %362 = vmatprep.subr.mxu0 0.0
    %363 = vmatpush1.msra.mxu0 %v336
    %364 = vmatprep.subr.mxu0 0.0
    %365 = vmatpush1.msra.mxu0 %v337
    %366 = vmatprep.subr.mxu0 0.0
    %367 = vmatpush1.msra.mxu0 %v338
    %368 = vmatprep.subr.mxu0 0.0
    %369 = vmatpush1.msra.mxu0 %v339
    %370 = vmatprep.subr.mxu0 0.0
    %371 = vmatpush1.msra.mxu0 %v340
    %372 = vmatprep.subr.mxu0 0.0
    %373 = vmatpush1.msra.mxu0 %v341
    %374 = vmatprep.subr.mxu0 0.0
    %375 = vmatpush1.msra.mxu0 %v342
    %376 = vmatprep.subr.mxu0 0.0
    %377 = vmatpush1.msra.mxu0 %v343
    %378 = vmatprep.subr.mxu0 0.0
    %379 = vmatpush1.msra.mxu0 %v344
    %380 = vmatprep.subr.mxu0 0.0
    %381 = vmatpush1.msra.mxu0 %v345
    %382 = vmatprep.subr.mxu0 0.0
    %383 = vmatpush1.msra.mxu0 %v346
    %384 = vmatprep.subr.mxu0 0.0
    %385 = vmatpush1.msra.mxu0 %v347
    %386 = vmatprep.subr.mxu0 0.0
    %387 = vmatpush1.msra.mxu0 %v348
    %388 = vmatprep.subr.mxu0 0.0
    %389 = vmatpush1.msra.mxu0 %v349
    %390 = vmatprep.subr.mxu0 0.0
    %391 = vmatpush1.msra.mxu0 0.0
    %392 = vmatprep.subr.mxu0 0.0
    %393 = vmatpush1.msra.mxu0 0.0
    %394 = vmatprep.subr.mxu0 0.0
    %395 = vmatpush1.msra.mxu0 0.0
    %396 = vmatprep.subr.mxu0 0.0
    %397 = vmatpush1.msra.mxu0 0.0
    %398 = vmatprep.subr.mxu0 0.0
    %399 = vmatpush1.msra.mxu0 0.0
    %400 = vmatprep.subr.mxu0 0.0
    %401 = vmatpush1.msra.mxu0 0.0
    %402 = vmatprep.subr.mxu0 0.0
    %403 = vmatpush1.msra.mxu0 0.0
    %404 = vmatprep.subr.mxu0 0.0
    %405 = vmatpush1.msra.mxu0 0.0
    %406 = vmatprep.subr.mxu0 0.0
    %407 = vmatpush1.msra.mxu0 0.0
    %408 = vmatprep.subr.mxu0 0.0
    %409 = vmatpush1.msra.mxu0 0.0
    %410 = vmatprep.subr.mxu0 0.0
    %411 = vmatpush1.msra.mxu0 0.0
    %412 = vmatprep.subr.mxu0 0.0
    %413 = vmatpush1.msra.mxu0 0.0
    %414 = vmatprep.subr.mxu0 0.0
    %415 = vmatpush1.msra.mxu0 0.0
    %416 = vmatprep.subr.mxu0 0.0
    %417 = vmatpush1.msra.mxu0 0.0
    %418 = vmatprep.subr.mxu0 0.0
    %419 = vmatpush1.msra.mxu0 0.0
    %420 = vmatprep.subr.mxu0 0.0
    %421 = vmatpush1.msra.mxu0 0.0
    %422 = vmatprep.mubr.f32.mxu0 0.0
    %423 = vmatmul.mubr.f32.gmra.mrb[0].mxu0 %v332
    %v424 = vpop.f32.mrb[0].mxu0
    %v425 = vadd.f32 %v356, %v424
    %v426 = vpop.f32.mrb[0].mxu0
    %427 = vdwg.mxu0
    %s428 = scalar_lea.vmem [#allocation2], 256
    %v429 = vld [vmem:[%s428] sm:$0xff]
    %v430 = vld [vmem:[%s428 + $0x8] sm:$0xff]
    %v431 = vld [vmem:[%s428 + $0x10] sm:$0xff]
    %v432 = vld [vmem:[%s428 + $0x18] sm:$0xff]
    %v433 = vld [vmem:[%s428 + $0x20] sm:$0xff]
    %v434 = vld [vmem:[%s428 + $0x28] sm:$0xff]
    %v435 = vld [vmem:[%s428 + $0x30] sm:$0xff]
    %v436 = vld [vmem:[%s428 + $0x38] sm:$0xff]
    %v437 = vld [vmem:[%s428 + $0x40] sm:$0xff]
    %v438 = vld [vmem:[%s428 + $0x48] sm:$0xff]
    %v439 = vld [vmem:[%s428 + $0x50] sm:$0xff]
    %v440 = vld [vmem:[%s428 + $0x58] sm:$0xff]
    %v441 = vld [vmem:[%s428 + $0x60] sm:$0xff]
    %v442 = vld [vmem:[%s428 + $0x68] sm:$0xff]
    %v443 = vld [vmem:[%s428 + $0x70] sm:$0xff]
    %v444 = vld [vmem:[%s428 + $0x78] sm:$0xff]
    %s445 = scalar_lea.vmem %s1, 2
    %v446 = vld [vmem:[%s445] sm:$0x1]
    %v448 = vlaneseq
    %v449 = vshrl.u32 %v448, 7
    %v450 = vsub.s32 0, %v449
    %v451 = vrot.slane %v446, %v450
    %453 = vmatprep.subr.mxu0 0.0
    %454 = vmatpush1.msra.mxu0 %v429
    %455 = vmatprep.subr.mxu0 0.0
    %456 = vmatpush1.msra.mxu0 %v430
    %457 = vmatprep.subr.mxu0 0.0
    %458 = vmatpush1.msra.mxu0 %v431
    %459 = vmatprep.subr.mxu0 0.0
    %460 = vmatpush1.msra.mxu0 %v432
    %461 = vmatprep.subr.mxu0 0.0
    %462 = vmatpush1.msra.mxu0 %v433
    %463 = vmatprep.subr.mxu0 0.0
    %464 = vmatpush1.msra.mxu0 %v434
    %465 = vmatprep.subr.mxu0 0.0
    %466 = vmatpush1.msra.mxu0 %v435
    %467 = vmatprep.subr.mxu0 0.0
    %468 = vmatpush1.msra.mxu0 %v436
    %469 = vmatprep.subr.mxu0 0.0
    %470 = vmatpush1.msra.mxu0 %v437
    %471 = vmatprep.subr.mxu0 0.0
    %472 = vmatpush1.msra.mxu0 %v438
    %473 = vmatprep.subr.mxu0 0.0
    %474 = vmatpush1.msra.mxu0 %v439
    %475 = vmatprep.subr.mxu0 0.0
    %476 = vmatpush1.msra.mxu0 %v440
    %477 = vmatprep.subr.mxu0 0.0
    %478 = vmatpush1.msra.mxu0 %v441
    %479 = vmatprep.subr.mxu0 0.0
    %480 = vmatpush1.msra.mxu0 %v442
    %481 = vmatprep.subr.mxu0 0.0
    %482 = vmatpush1.msra.mxu0 %v443
    %483 = vmatprep.subr.mxu0 0.0
    %484 = vmatpush1.msra.mxu0 %v444
    %485 = vmatprep.subr.mxu0 0.0
    %486 = vmatpush1.msra.mxu0 0.0
    %487 = vmatprep.subr.mxu0 0.0
    %488 = vmatpush1.msra.mxu0 0.0
    %489 = vmatprep.subr.mxu0 0.0
    %490 = vmatpush1.msra.mxu0 0.0
    %491 = vmatprep.subr.mxu0 0.0
    %492 = vmatpush1.msra.mxu0 0.0
    %493 = vmatprep.subr.mxu0 0.0
    %494 = vmatpush1.msra.mxu0 0.0
    %495 = vmatprep.subr.mxu0 0.0
    %496 = vmatpush1.msra.mxu0 0.0
    %497 = vmatprep.subr.mxu0 0.0
    %498 = vmatpush1.msra.mxu0 0.0
    %499 = vmatprep.subr.mxu0 0.0
    %500 = vmatpush1.msra.mxu0 0.0
    %501 = vmatprep.subr.mxu0 0.0
    %502 = vmatpush1.msra.mxu0 0.0
    %503 = vmatprep.subr.mxu0 0.0
    %504 = vmatpush1.msra.mxu0 0.0
    %505 = vmatprep.subr.mxu0 0.0
    %506 = vmatpush1.msra.mxu0 0.0
    %507 = vmatprep.subr.mxu0 0.0
    %508 = vmatpush1.msra.mxu0 0.0
    %509 = vmatprep.subr.mxu0 0.0
    %510 = vmatpush1.msra.mxu0 0.0
    %511 = vmatprep.subr.mxu0 0.0
    %512 = vmatpush1.msra.mxu0 0.0
    %513 = vmatprep.subr.mxu0 0.0
    %514 = vmatpush1.msra.mxu0 0.0
    %515 = vmatprep.subr.mxu0 0.0
    %516 = vmatpush1.msra.mxu0 0.0
    %517 = vmatprep.mubr.f32.mxu0 0.0
    %518 = vmatmul.mubr.f32.gmra.mrb[0].mxu0 %v425
    %v519 = vpop.f32.mrb[0].mxu0
    %v520 = vadd.f32 %v451, %v519
    %v521 = vpop.f32.mrb[0].mxu0
    %522 = vdwg.mxu0
    %v523 = vmax.f32 %v520, 0.0
    %s524 = scalar_lea.vmem [#allocation5], 256
    %v525 = vld [vmem:[%s524] sm:$0xff]
    %v526 = vld [vmem:[%s524 + $0x8] sm:$0xff]
    %v527 = vld [vmem:[%s524 + $0x10] sm:$0xff]
    %v528 = vld [vmem:[%s524 + $0x18] sm:$0xff]
    %v529 = vld [vmem:[%s524 + $0x20] sm:$0xff]
    %v530 = vld [vmem:[%s524 + $0x28] sm:$0xff]
    %v531 = vld [vmem:[%s524 + $0x30] sm:$0xff]
    %v532 = vld [vmem:[%s524 + $0x38] sm:$0xff]
    %v533 = vld [vmem:[%s524 + $0x40] sm:$0xff]
    %v534 = vld [vmem:[%s524 + $0x48] sm:$0xff]
    %v535 = vld [vmem:[%s524 + $0x50] sm:$0xff]
    %v536 = vld [vmem:[%s524 + $0x58] sm:$0xff]
    %v537 = vld [vmem:[%s524 + $0x60] sm:$0xff]
    %v538 = vld [vmem:[%s524 + $0x68] sm:$0xff]
    %v539 = vld [vmem:[%s524 + $0x70] sm:$0xff]
    %v540 = vld [vmem:[%s524 + $0x78] sm:$0xff]
    %s541 = scalar_lea.vmem %s3, 2
    %v542 = vld [vmem:[%s541] sm:$0x1]
    %v544 = vlaneseq
    %v545 = vshrl.u32 %v544, 7
    %v546 = vsub.s32 0, %v545
    %v547 = vrot.slane %v542, %v546
    %549 = vmatprep.subr.mxu0 0.0
    %550 = vmatpush1.msra.mxu0 %v525
    %551 = vmatprep.subr.mxu0 0.0
    %552 = vmatpush1.msra.mxu0 %v526
    %553 = vmatprep.subr.mxu0 0.0
    %554 = vmatpush1.msra.mxu0 %v527
    %555 = vmatprep.subr.mxu0 0.0
    %556 = vmatpush1.msra.mxu0 %v528
    %557 = vmatprep.subr.mxu0 0.0
    %558 = vmatpush1.msra.mxu0 %v529
    %559 = vmatprep.subr.mxu0 0.0
    %560 = vmatpush1.msra.mxu0 %v530
    %561 = vmatprep.subr.mxu0 0.0
    %562 = vmatpush1.msra.mxu0 %v531
    %563 = vmatprep.subr.mxu0 0.0
    %564 = vmatpush1.msra.mxu0 %v532
    %565 = vmatprep.subr.mxu0 0.0
    %566 = vmatpush1.msra.mxu0 %v533
    %567 = vmatprep.subr.mxu0 0.0
    %568 = vmatpush1.msra.mxu0 %v534
    %569 = vmatprep.subr.mxu0 0.0
    %570 = vmatpush1.msra.mxu0 %v535
    %571 = vmatprep.subr.mxu0 0.0
    %572 = vmatpush1.msra.mxu0 %v536
    %573 = vmatprep.subr.mxu0 0.0
    %574 = vmatpush1.msra.mxu0 %v537
    %575 = vmatprep.subr.mxu0 0.0
    %576 = vmatpush1.msra.mxu0 %v538
    %577 = vmatprep.subr.mxu0 0.0
    %578 = vmatpush1.msra.mxu0 %v539
    %579 = vmatprep.subr.mxu0 0.0
    %580 = vmatpush1.msra.mxu0 %v540
    %581 = vmatprep.subr.mxu0 0.0
    %582 = vmatpush1.msra.mxu0 0.0
    %583 = vmatprep.subr.mxu0 0.0
    %584 = vmatpush1.msra.mxu0 0.0
    %585 = vmatprep.subr.mxu0 0.0
    %586 = vmatpush1.msra.mxu0 0.0
    %587 = vmatprep.subr.mxu0 0.0
    %588 = vmatpush1.msra.mxu0 0.0
    %589 = vmatprep.subr.mxu0 0.0
    %590 = vmatpush1.msra.mxu0 0.0
    %591 = vmatprep.subr.mxu0 0.0
    %592 = vmatpush1.msra.mxu0 0.0
    %593 = vmatprep.subr.mxu0 0.0
    %594 = vmatpush1.msra.mxu0 0.0
    %595 = vmatprep.subr.mxu0 0.0
    %596 = vmatpush1.msra.mxu0 0.0
    %597 = vmatprep.subr.mxu0 0.0
    %598 = vmatpush1.msra.mxu0 0.0
    %599 = vmatprep.subr.mxu0 0.0
    %600 = vmatpush1.msra.mxu0 0.0
    %601 = vmatprep.subr.mxu0 0.0
    %602 = vmatpush1.msra.mxu0 0.0
    %603 = vmatprep.subr.mxu0 0.0
    %604 = vmatpush1.msra.mxu0 0.0
    %605 = vmatprep.subr.mxu0 0.0
    %606 = vmatpush1.msra.mxu0 0.0
    %607 = vmatprep.subr.mxu0 0.0
    %608 = vmatpush1.msra.mxu0 0.0
    %609 = vmatprep.subr.mxu0 0.0
    %610 = vmatpush1.msra.mxu0 0.0
    %611 = vmatprep.subr.mxu0 0.0
    %612 = vmatpush1.msra.mxu0 0.0
    %613 = vmatprep.mubr.f32.mxu0 0.0
    %614 = vmatmul.mubr.f32.gmra.mrb[0].mxu0 %v523
    %v615 = vpop.f32.mrb[0].mxu0
    %v616 = vadd.f32 %v547, %v615
    %v617 = vpop.f32.mrb[0].mxu0
    %618 = vdwg.mxu0
    %619 = vst [vmem:[#allocation7] sm:$0xff] %v616
    // Predicated region
    $region30: #{tpu_custom_call.1} parent=1 // pred_check
      _
    $region31: #{tpu_custom_call.1} parent=1 // pred_check_branch
      %621 = sbr.rel (0) target = $region33
    $region32: #{tpu_custom_call.1} parent=1 // pred_region
      %s623 = ssub.s32 128, 128
      %624 = vsyncadd [#allocation4], %s623
      %s626 = sshll.u32 [#allocation7], 4
      %s627 = int_to_ptr.vmem [resolvable:$true] %s626
      %629 = dma.vmem_to_hbm [thread:$0]  %s627, 128, %s5, [#allocation4]
    $region33: #{tpu_custom_call.1} parent=1 // pred_fallthru
      _
    // Predicated region
    $region34: #{tpu_custom_call.1} parent=1 // pred_check
      _
    $region35: #{tpu_custom_call.1} parent=1 // pred_check_branch
      %631 = sbr.rel (0) target = $region37
    $region36: #{tpu_custom_call.1} parent=1 // pred_region
      %632 = dma.done [#allocation4], 128
    $region37: #{tpu_custom_call.1} parent=1 // pred_fallthru
      _
    %633 = vsyncpa [#allocation3], 1
    %634 = vsyncpa [#allocation6], 1
    %635 = vsyncpa [#allocation4], 1

</llo_original>
